<compile_context>
chip_gen: v7x
topology: tpu7x:2x2x1
jax: 0.10.0
libtpu: 0.0.40
codegen_flags: <defaults>
</compile_context>

<pallas_src>
import jax
import jax.numpy as jnp
from jax.experimental import pallas as pl
from jax.experimental.pallas import tpu as pltpu

_VMEM_LIMIT = 32 * 1024 * 1024


def _round_up(x, m):
    return (x + m - 1) // m * m


# ----------------------------------------------------------------------------
# Pallas kernels
# ----------------------------------------------------------------------------
def _make_matmul_kernel(apply_relu, has_residual):
    """out = maybe_relu((A @ B) * scale + bias [+ residual]); f32 accumulator."""
    def kernel(*refs):
        if has_residual:
            a_ref, b_ref, s_ref, c_ref, r_ref, o_ref, acc_ref = refs
        else:
            a_ref, b_ref, s_ref, c_ref, o_ref, acc_ref = refs
            r_ref = None

        @pl.when(pl.program_id(2) == 0)
        def _():
            acc_ref[...] = jnp.zeros_like(acc_ref)

        acc_ref[...] += jnp.dot(a_ref[...], b_ref[...],
                                preferred_element_type=jnp.float32)

        @pl.when(pl.program_id(2) == pl.num_programs(2) - 1)
        def _():
            y = acc_ref[...] * s_ref[...] + c_ref[...]
            if has_residual:
                y = y + r_ref[...].astype(jnp.float32)
            if apply_relu:
                y = jnp.maximum(y, 0.0)
            o_ref[...] = y.astype(o_ref.dtype)

    return kernel


def _window_max_kernel(c_ref, o_ref):
    # Tap axis is leading -> each tap is a clean (rows, C) tile; reduce over it.
    o_ref[...] = jnp.max(c_ref[...], axis=0)


def _mean_kernel(x_ref, o_ref):
    # Spatial axis is leading -> reduce over it.
    o_ref[...] = jnp.mean(x_ref[...], axis=0).astype(o_ref.dtype)


# ----------------------------------------------------------------------------
# Tiling / weight preparation (done once, at init time)
# ----------------------------------------------------------------------------
def _choose_tiles(K, N):
    Kp = _round_up(K, 128)
    if Kp > 8192:              # very deep reductions: tile K in 512-chunks
        tk = 512
        Kp = _round_up(K, tk)
    else:                      # otherwise keep the whole K in one tile (1 k-step)
        tk = Kp
    Npad = _round_up(N, 128)
    tn = min(256, Npad)
    Np = _round_up(N, tn)
    return tk, Kp, tn, Np


def prepare_matmul(b_mat, scale, bias, kh=1, kw=1):
    """Pad (K, N) weights to tile multiples, cast to bf16, store tile choices."""
    K, N = b_mat.shape
    tk, Kp, tn, Np = _choose_tiles(K, N)
    return {
        "b": jnp.pad(b_mat, ((0, Kp - K), (0, Np - N))).astype(jnp.bfloat16),
        "scale": jnp.pad(scale.astype(jnp.float32).reshape(1, N),
                         ((0, 0), (0, Np - N))),
        "bias": jnp.pad(bias.astype(jnp.float32).reshape(1, N),
                        ((0, 0), (0, Np - N))),
        "K": K, "N": N, "Kp": Kp, "Np": Np, "tk": tk, "tn": tn,
        "kh": kh, "kw": kw,
    }


def prepare_conv(w, conv_bias, bn):
    """Fold BN (eval) into scale/bias, OIHW -> (kh*kw*Cin, Cout), pad + bf16."""
    Cout, Cin, kh, kw = w.shape
    b_mat = jnp.transpose(w, (2, 3, 1, 0)).reshape(kh * kw * Cin, Cout)
    gamma, beta, mean, var, eps = bn
    scale = gamma / jnp.sqrt(var + eps)
    bias = beta - mean * scale
    if conv_bias is not None:
        bias = bias + conv_bias * scale
    return prepare_matmul(b_mat, scale, bias, kh=kh, kw=kw)


# ----------------------------------------------------------------------------
# Fused matmul wrapper
# ----------------------------------------------------------------------------
def fused_matmul(a, prep, *, relu, residual=None):
    M, K = a.shape
    assert K == prep["K"], (K, prep["K"])
    Kp, Np, tk, tn, Ncols = prep["Kp"], prep["Np"], prep["tk"], prep["tn"], prep["N"]

    # Adaptive M tile: round tiny M up to the bf16 sublane pack (16), not 128.
    tm = min(256, _round_up(M, 16))
    Mp = _round_up(M, tm)
    # v7x has 2 TensorCores: if only one (i, j) output tile exists, split N.
    if Mp // tm == 1 and Np // tn == 1 and tn >= 256:
        tn //= 2

    a_p = jnp.pad(a.astype(jnp.bfloat16), ((0, Mp - M), (0, Kp - K)))
    inputs = [a_p, prep["b"], prep["scale"], prep["bias"]]
    in_specs = [
        pl.BlockSpec((tm, tk), lambda i, j, k: (i, k)),
        pl.BlockSpec((tk, tn), lambda i, j, k: (k, j)),
        pl.BlockSpec((1, tn), lambda i, j, k: (0, j)),
        pl.BlockSpec((1, tn), lambda i, j, k: (0, j)),
    ]
    has_res = residual is not None
    if has_res:
        r_p = jnp.pad(residual.astype(jnp.float32),
                      ((0, Mp - M), (0, Np - Ncols)))
        inputs.append(r_p)
        in_specs.append(pl.BlockSpec((tm, tn), lambda i, j, k: (i, j)))

    bytes_accessed = (a_p.size * 2 + prep["b"].size * 2 + Mp * Np * 4
                      + (Mp * Np * 4 if has_res else 0) + 2 * Np * 4)

    out = pl.pallas_call(
        _make_matmul_kernel(relu, has_res),
        out_shape=jax.ShapeDtypeStruct((Mp, Np), jnp.float32),
        grid_spec=pltpu.PrefetchScalarGridSpec(
            num_scalar_prefetch=0,
            grid=(Mp // tm, Np // tn, Kp // tk),
            in_specs=in_specs,
            out_specs=pl.BlockSpec((tm, tn), lambda i, j, k: (i, j)),
            scratch_shapes=[pltpu.VMEM((tm, tn), jnp.float32)],
        ),
        compiler_params=pltpu.CompilerParams(
            dimension_semantics=("parallel", "parallel", "arbitrary"),
            vmem_limit_bytes=_VMEM_LIMIT),
        cost_estimate=pl.CostEstimate(
            flops=2 * M * Ncols * K,
            transcendentals=0,
            bytes_accessed=int(bytes_accessed)),
    )(*inputs)
    return out[:M, :Ncols]


# ----------------------------------------------------------------------------
# Conv / pool wrappers (im2col glue in XLA; all heavy compute inside Pallas)
# ----------------------------------------------------------------------------
def im2col(x, kh, kw, stride, pad):
    """x: (N, H, W, C) -> patches (N, Ho, Wo, kh*kw, C) (bf16 when x is bf16)."""
    # TODO(synk): fold this patch gather into the matmul kernel (manual DMA from
    # the NHWC activation in HBM / shifted-matmul K axis) to avoid materializing
    # the kh*kw-expanded patch tensor in HBM.
    N, H, W, C = x.shape
    Ho = (H + 2 * pad - kh) // stride + 1
    Wo = (W + 2 * pad - kw) // stride + 1
    xp = jnp.pad(x, ((0, 0), (pad, pad), (pad, pad), (0, 0)))
    cols = [xp[:, i:i + stride * Ho:stride, j:j + stride * Wo:stride, :]
            for i in range(kh) for j in range(kw)]
    cols = jnp.stack(cols, axis=3)  # (N, Ho, Wo, kh*kw, C)
    return cols, (N, Ho, Wo)


def conv_bn_act(x, prep, *, stride, pad, relu, residual=None):
    """Conv2d + folded BatchNorm(eval) + optional ReLU and fused residual add."""
    N, H, W, Cin = x.shape
    kh, kw = prep["kh"], prep["kw"]
    if kh == 1 and kw == 1 and pad == 0:
        xs = x[:, ::stride, ::stride, :]        # 1x1 conv: no im2col needed
        Ho, Wo = xs.shape[1], xs.shape[2]
        a = xs.reshape(N * Ho * Wo, Cin)
    else:
        cols, (_, Ho, Wo) = im2col(x.astype(jnp.bfloat16), kh, kw, stride, pad)
        a = cols.reshape(N * Ho * Wo, kh * kw * Cin)
    r = residual.reshape(N * Ho * Wo, prep["N"]) if residual is not None else None
    out = fused_matmul(a, prep, relu=relu, residual=r)
    return out.reshape(N, Ho, Wo, prep["N"])


def max_pool_3x3_s2(x):
    N, H, W, C = x.shape
    pad = 1
    Ho = (H + 2 * pad - 3) // 2 + 1
    Wo = (W + 2 * pad - 3) // 2 + 1
    xp = jnp.pad(x, ((0, 0), (pad, pad), (pad, pad), (0, 0)),
                 constant_values=-jnp.inf)
    taps = [xp[:, i:i + 2 * Ho:2, j:j + 2 * Wo:2, :]
            for i in range(3) for j in range(3)]
    cols = jnp.stack(taps, axis=0).reshape(9, N * Ho * Wo, C)   # tap axis leading
    M = N * Ho * Wo
    tr = min(512, _round_up(M, 8))
    Mp = _round_up(M, tr)
    cols = jnp.pad(cols, ((0, 0), (0, Mp - M), (0, 0)))
    out = pl.pallas_call(
        _window_max_kernel,
        out_shape=jax.ShapeDtypeStruct((Mp, C), x.dtype),
        grid_spec=pltpu.PrefetchScalarGridSpec(
            num_scalar_prefetch=0,
            grid=(Mp // tr,),
            in_specs=[pl.BlockSpec((9, tr, C), lambda r: (0, r, 0))],
            out_specs=pl.BlockSpec((tr, C), lambda r: (r, 0)),
        ),
        compiler_params=pltpu.CompilerParams(
            dimension_semantics=("parallel",),
            vmem_limit_bytes=_VMEM_LIMIT),
    )(cols)
    return out[:M].reshape(N, Ho, Wo, C)


def global_avg_pool(x):
    N, H, W, C = x.shape
    HW = H * W
    xr = jnp.transpose(x.reshape(N, HW, C), (1, 0, 2))   # (HW, N, C): reduce axis leads
    tr = min(256, _round_up(N, 8))
    Np_ = _round_up(N, tr)
    xr = jnp.pad(xr, ((0, 0), (0, Np_ - N), (0, 0)))
    out = pl.pallas_call(
        _mean_kernel,
        out_shape=jax.ShapeDtypeStruct((Np_, C), x.dtype),
        grid_spec=pltpu.PrefetchScalarGridSpec(
            num_scalar_prefetch=0,
            grid=(Np_ // tr,),
            in_specs=[pl.BlockSpec((HW, tr, C), lambda r: (0, r, 0))],
            out_specs=pl.BlockSpec((tr, C), lambda r: (r, 0)),
        ),
        compiler_params=pltpu.CompilerParams(
            dimension_semantics=("parallel",),
            vmem_limit_bytes=_VMEM_LIMIT),
    )(xr)
    return out[:N]


# ----------------------------------------------------------------------------
# Parameter initialization (deterministic, PyTorch shapes) + one-time prep
# ----------------------------------------------------------------------------
def init_conv(key, cout, cin, kh, kw):
    std = (2.0 / (cin * kh * kw)) ** 0.5
    return jax.random.normal(key, (cout, cin, kh, kw), jnp.float32) * std


def init_bn(key, c):
    k1, k2, k3, k4 = jax.random.split(key, 4)
    gamma = 1.0 + 0.1 * jax.random.normal(k1, (c,), jnp.float32)
    beta = 0.1 * jax.random.normal(k2, (c,), jnp.float32)
    mean = 0.1 * jax.random.normal(k3, (c,), jnp.float32)
    var = 1.0 + 0.1 * jax.random.uniform(k4, (c,), jnp.float32)
    return (gamma, beta, mean, var, 1e-5)


def init_basic_block(key, cin, planes, stride):
    ks = jax.random.split(key, 6)
    p = {
        "conv1": init_conv(ks[0], planes, cin, 3, 3),
        "bn1": init_bn(ks[1], planes),
        "conv2": init_conv(ks[2], planes, planes, 3, 3),
        "bn2": init_bn(ks[3], planes),
        "stride": stride,
        "downsample": None,
    }
    if stride != 1 or cin != planes:  # expansion = 1
        p["downsample"] = {
            "conv": init_conv(ks[4], planes, cin, 1, 1),
            "bias": 0.01 * jax.random.normal(jax.random.fold_in(ks[4], 1),
                                             (planes,), jnp.float32),
            "bn": init_bn(ks[5], planes),
        }
    return p


def init_resnet(key, layer_list, num_classes, num_channels=3):
    keys = jax.random.split(key, 8)
    params = {
        "conv1": init_conv(keys[0], 64, num_channels, 7, 7),
        "bn1": init_bn(keys[1], 64),
    }
    in_ch = 64
    planes_list = [64, 128, 256, 512]
    strides = [1, 2, 2, 2]
    layers = []
    for li, (blocks, planes, stride) in enumerate(zip(layer_list, planes_list, strides)):
        lkeys = jax.random.split(keys[2 + li], blocks)
        blist = []
        for bi in range(blocks):
            s = stride if bi == 0 else 1
            blist.append(init_basic_block(lkeys[bi], in_ch, planes, s))
            in_ch = planes
        layers.append(blist)
    params["layers"] = layers
    bound = (1.0 / in_ch) ** 0.5
    params["fc_w"] = jax.random.uniform(keys[6], (num_classes, in_ch),
                                        jnp.float32, -bound, bound)
    params["fc_b"] = jax.random.uniform(keys[7], (num_classes,),
                                        jnp.float32, -bound, bound)
    return params


def prepare_resnet(raw):
    """One-time weight transform: BN fold, transpose, pad, bf16 cast, tile choice."""
    fc_n = raw["fc_b"].shape[0]
    prepared = {
        "stem": prepare_conv(raw["conv1"], None, raw["bn1"]),
        "blocks": [],
        "fc": prepare_matmul(raw["fc_w"].T, jnp.ones((fc_n,), jnp.float32),
                             raw["fc_b"]),
    }
    for layer in raw["layers"]:
        for bp in layer:
            blk = {
                "conv1": prepare_conv(bp["conv1"], None, bp["bn1"]),
                "conv2": prepare_conv(bp["conv2"], None, bp["bn2"]),
                "stride": bp["stride"],
                "downsample": None,
            }
            if bp["downsample"] is not None:
                ds = bp["downsample"]
                blk["downsample"] = prepare_conv(ds["conv"], ds["bias"], ds["bn"])
            prepared["blocks"].append(blk)
    return prepared


# ----------------------------------------------------------------------------
# Forward pass
# ----------------------------------------------------------------------------
def basic_block_forward(x, p):
    out1 = conv_bn_act(x, p["conv1"], stride=p["stride"], pad=1, relu=True)
    if p["downsample"] is not None:
        identity = conv_bn_act(x, p["downsample"], stride=p["stride"], pad=0,
                               relu=False)
    else:
        identity = x
    # Second conv: residual add + ReLU fused into the matmul epilogue.
    return conv_bn_act(out1, p["conv2"], stride=1, pad=1, relu=True,
                       residual=identity)


def resnet_forward(params, x_nchw):
    # NCHW (PyTorch) -> NHWC for the kernel path.
    x = jnp.transpose(x_nchw, (0, 2, 3, 1)).astype(jnp.float32)
    x = conv_bn_act(x, params["stem"], stride=2, pad=3, relu=True)
    x = max_pool_3x3_s2(x)
    for bp in params["blocks"]:
        x = basic_block_forward(x, bp)
    x = global_avg_pool(x)                      # adaptive avg pool (1,1) + flatten
    logits = fused_matmul(x, params["fc"], relu=False)
    return logits


# ----------------------------------------------------------------------------
if __name__ == "__main__":
    key = jax.random.PRNGKey(0)
    kp, kx, ka, kb = jax.random.split(key, 4)

    # Quick self-check of the fused matmul kernel (bf16 operands, f32 accumulate).
    a = jax.random.normal(ka, (37, 53), jnp.float32)
    b = jax.random.normal(kb, (53, 19), jnp.float32)
    s = jnp.linspace(0.5, 1.5, 19, dtype=jnp.float32)
    c = jnp.linspace(-0.2, 0.2, 19, dtype=jnp.float32)
    prep = prepare_matmul(b, s, c)
    got = fused_matmul(a, prep, relu=True)
    a16 = a.astype(jnp.bfloat16).astype(jnp.float32)
    b16 = b.astype(jnp.bfloat16).astype(jnp.float32)
    ref = jnp.maximum(a16 @ b16 * s + c, 0.0)
    assert jnp.allclose(got, ref, atol=2e-2, rtol=2e-2), "fused matmul mismatch"

    # ResNet(BasicBlock, [1,1,1,1], num_classes=10, num_channels=3)
    raw = init_resnet(kp, layer_list=[1, 1, 1, 1], num_classes=10, num_channels=3)
    params = prepare_resnet(raw)

    x = jax.random.normal(kx, (2, 3, 32, 32), jnp.float32)  # NCHW, PyTorch convention
    fwd = jax.jit(lambda inp: resnet_forward(params, inp))
    logits = jax.block_until_ready(fwd(x))

    assert logits.shape == (2, 10), logits.shape
    assert bool(jnp.all(jnp.isfinite(logits)))
    print("KERNEL_OK")
</pallas_src>

<mosaic_0001>
module attributes {stable_mosaic.version = 11 : i64} {
  func.func @kernel(%arg0: i32, %arg1: i32, %arg2: i32, %arg3: memref<48x128xbf16, #tpu.memory_space<vmem>>, %arg4: memref<128x128xbf16, #tpu.memory_space<vmem>>, %arg5: memref<1x128xf32, #tpu.memory_space<vmem>>, %arg6: memref<1x128xf32, #tpu.memory_space<vmem>>, %arg7: memref<48x128xf32, #tpu.memory_space<vmem>>, %arg8: memref<48x128xf32, #tpu.memory_space<vmem>>) attributes {dimension_semantics = [#tpu.dimension_semantics<parallel>, #tpu.dimension_semantics<parallel>, #tpu.dimension_semantics<arbitrary>], iteration_bounds = array<i64: 1, 1, 1>, scalar_prefetch = 0 : i64, scratch_operands = 1 : i64, tpu.core_type = #tpu.core_type<tc>, window_params = [{transform_indices = @transform_0, window_bounds = array<i64: 48, 128>}, {transform_indices = @transform_1, window_bounds = array<i64: 128, 128>}, {transform_indices = @transform_2, window_bounds = array<i64: 1, 128>}, {transform_indices = @transform_3, window_bounds = array<i64: 1, 128>}, {transform_indices = @transform_4, window_bounds = array<i64: 48, 128>}]} {
    %c0_i32 = arith.constant 0 : i32
    %0 = arith.cmpi eq, %arg2, %c0_i32 : i32
    %1 = arith.extui %0 : i1 to i32
    %c0_i32_0 = arith.constant 0 : i32
    %2 = arith.cmpi ne, %1, %c0_i32_0 : i32
    scf.if %2 {
      %cst_10 = arith.constant 0.000000e+00 : f32
      %12 = vector.broadcast %cst_10 : f32 to vector<48x128xf32>
      %c0_11 = arith.constant 0 : index
      %c0_12 = arith.constant 0 : index
      %13 = vector.load %arg8[%c0_11, %c0_12] : memref<48x128xf32, #tpu.memory_space<vmem>>, vector<48x128xf32>
      tpu.vector_store %arg8[%c0_11, %c0_12], %12 {strides = array<i32>} : memref<48x128xf32, #tpu.memory_space<vmem>>, vector<48x128xf32>,
    } else {
    }
    %c0 = arith.constant 0 : index
    %c0_1 = arith.constant 0 : index
    %3 = vector.load %arg8[%c0, %c0_1] : memref<48x128xf32, #tpu.memory_space<vmem>>, vector<48x128xf32>
    %c0_2 = arith.constant 0 : index
    %c0_3 = arith.constant 0 : index
    %4 = vector.load %arg3[%c0_2, %c0_3] : memref<48x128xbf16, #tpu.memory_space<vmem>>, vector<48x128xbf16>
    %c0_4 = arith.constant 0 : index
    %c0_5 = arith.constant 0 : index
    %5 = vector.load %arg4[%c0_4, %c0_5] : memref<128x128xbf16, #tpu.memory_space<vmem>>, vector<128x128xbf16>
    %cst = arith.constant dense<0.000000e+00> : vector<48x128xf32>
    %6 = tpu.matmul %4, %5, %cst {dimension_numbers = #tpu.dot_dimension_numbers<[1], [0], [0], [1], [0, 0, 1, 1], [], []>} : vector<48x128xbf16>, vector<128x128xbf16>, vector<48x128xf32> -> vector<48x128xf32>
    %7 = arith.addf %3, %6 : vector<48x128xf32>
    %c0_6 = arith.constant 0 : index
    %c0_7 = arith.constant 0 : index
    %8 = vector.load %arg8[%c0_6, %c0_7] : memref<48x128xf32, #tpu.memory_space<vmem>>, vector<48x128xf32>
    tpu.vector_store %arg8[%c0_6, %c0_7], %7 {strides = array<i32>} : memref<48x128xf32, #tpu.memory_space<vmem>>, vector<48x128xf32>,
    %c0_i32_8 = arith.constant 0 : i32
    %9 = arith.cmpi eq, %arg2, %c0_i32_8 : i32
    %10 = arith.extui %9 : i1 to i32
    %c0_i32_9 = arith.constant 0 : i32
    %11 = arith.cmpi ne, %10, %c0_i32_9 : i32
    scf.if %11 {
      %c0_10 = arith.constant 0 : index
      %c0_11 = arith.constant 0 : index
      %12 = vector.load %arg8[%c0_10, %c0_11] : memref<48x128xf32, #tpu.memory_space<vmem>>, vector<48x128xf32>
      %c0_12 = arith.constant 0 : index
      %c0_13 = arith.constant 0 : index
      %13 = vector.load %arg5[%c0_12, %c0_13] : memref<1x128xf32, #tpu.memory_space<vmem>>, vector<1x128xf32>
      %14 = vector.broadcast %13 : vector<1x128xf32> to vector<48x128xf32>
      %15 = arith.mulf %12, %14 : vector<48x128xf32>
      %c0_14 = arith.constant 0 : index
      %c0_15 = arith.constant 0 : index
      %16 = vector.load %arg6[%c0_14, %c0_15] : memref<1x128xf32, #tpu.memory_space<vmem>>, vector<1x128xf32>
      %17 = vector.broadcast %16 : vector<1x128xf32> to vector<48x128xf32>
      %18 = arith.addf %15, %17 : vector<48x128xf32>
      %cst_16 = arith.constant 0.000000e+00 : f32
      %19 = vector.broadcast %cst_16 : f32 to vector<48x128xf32>
      %20 = arith.maximumf %18, %19 : vector<48x128xf32>
      %c0_17 = arith.constant 0 : index
      %c0_18 = arith.constant 0 : index
      %21 = vector.load %arg7[%c0_17, %c0_18] : memref<48x128xf32, #tpu.memory_space<vmem>>, vector<48x128xf32>
      tpu.vector_store %arg7[%c0_17, %c0_18], %20 {strides = array<i32>} : memref<48x128xf32, #tpu.memory_space<vmem>>, vector<48x128xf32>,
    } else {
    }
    return
  }
  func.func @transform_0(%arg0: i32, %arg1: i32, %arg2: i32) -> (i32, i32) {
    %c0_i32 = arith.constant 0 : i32
    return %arg0, %arg2 : i32, i32
  }
  func.func @transform_1(%arg0: i32, %arg1: i32, %arg2: i32) -> (i32, i32) {
    %c0_i32 = arith.constant 0 : i32
    return %arg2, %arg1 : i32, i32
  }
  func.func @transform_2(%arg0: i32, %arg1: i32, %arg2: i32) -> (i32, i32) {
    %c0_i32 = arith.constant 0 : i32
    %c0_i32_0 = arith.constant 0 : i32
    return %c0_i32, %arg1 : i32, i32
  }
  func.func @transform_3(%arg0: i32, %arg1: i32, %arg2: i32) -> (i32, i32) {
    %c0_i32 = arith.constant 0 : i32
    %c0_i32_0 = arith.constant 0 : i32
    return %c0_i32, %arg1 : i32, i32
  }
  func.func @transform_4(%arg0: i32, %arg1: i32, %arg2: i32) -> (i32, i32) {
    %c0_i32 = arith.constant 0 : i32
    return %arg0, %arg1 : i32, i32
  }
}

</mosaic_0001>

<llo_original>
// kernel: tpu_custom_call.1
$region0: #{tpu_custom_call.1}
  #allocation0 [shape = 'u32[]', space=smem, size = 0x4, offset = 0x4, fixed_abs, tag = 'smem constant byte address 0x4 - core index']
  #allocation1 [shape = 'u32[144,128]{1,0:T(1,128)}', space=vmem, size = 0x12000, scoped, tag = 'internal scratch']
  #allocation2 [shape = 'f32[48,128]{1,0:T(8,128)}', space=vmem, size = 0x6000, scoped, tag = 'scratch operand']
  %s0 = inlined_call_operand.hbm [shape: bf16[48,128], index: 0, kind: input, shape index: {}]
  %s1 = inlined_call_operand.hbm [shape: bf16[128,128], index: 1, kind: input, shape index: {}]
  %s2 = inlined_call_operand.vmem [shape: f32[1,128], index: 2, kind: input, shape index: {}]
  %s3 = inlined_call_operand.vmem [shape: f32[1,128], index: 3, kind: input, shape index: {}]
  %s4 = inlined_call_operand.hbm [shape: f32[48,128], index: 4, kind: output, shape index: {}]
  %s5 = sld [smem:[#allocation0]]
  $region42: #{tpu_custom_call.1} parent=0
    _
  %s7 = ssub.s32 1, %s5
  %s8 = scalar_select 0, %s7, %s5
  $region1: #{tpu_custom_call.1} parent=0
    #allocation3 [shape = 'u8[12288]{0}', space=vmem, size = 0x3000, scoped, tag = 'input window, operand 0, single buffered']
    #allocation4 [shape = 's32[1]{0}', space=sflag, size = 0x4, scoped, tag = 'scoped memory for tpu_custom_call.1']
    #allocation5 [shape = 's32[1]{0}', space=sflag, size = 0x4, scoped, tag = 'scoped memory for tpu_custom_call.1']
    #allocation6 [shape = 'u8[32768]{0}', space=vmem, size = 0x8000, scoped, tag = 'input window, operand 1, single buffered']
    #allocation7 [shape = 's32[1]{0}', space=sflag, size = 0x4, scoped, tag = 'scoped memory for tpu_custom_call.1']
    #allocation8 [shape = 'u8[24576]{0}', space=vmem, size = 0x6000, scoped, tag = 'output window, operand 0, single buffered']
    %9 = vsyncpa [#allocation4], 0
    %10 = vsyncpa [#allocation7], 0
    %11 = vsyncpa [#allocation5], 0
    // Predicated region
    $region2: #{tpu_custom_call.1} parent=1 // pred_check
      _
    $region3: #{tpu_custom_call.1} parent=1 // pred_check_branch
      %13 = sbr.rel (0) target = $region5
    $region4: #{tpu_custom_call.1} parent=1 // pred_region
      %s15 = ssub.s32 384, 384
      %16 = vsyncadd [#allocation4], %s15
      %s17 = sshll.u32 [#allocation3], 4
      %s18 = int_to_ptr.vmem [resolvable:$true] %s17
      %23 = dma.hbm_to_vmem [thread:$0]  %s0, 384, %s18, [#allocation4], 64, 64, 4
    $region5: #{tpu_custom_call.1} parent=1 // pred_fallthru
      _
    // Predicated region
    $region6: #{tpu_custom_call.1} parent=1 // pred_check
      _
    $region7: #{tpu_custom_call.1} parent=1 // pred_check_branch
      %25 = sbr.rel (0) target = $region9
    $region8: #{tpu_custom_call.1} parent=1 // pred_region
      %s27 = ssub.s32 1024, 1024
      %28 = vsyncadd [#allocation7], %s27
      %s29 = sshll.u32 [#allocation6], 4
      %s30 = int_to_ptr.vmem [resolvable:$true] %s29
      %35 = dma.hbm_to_vmem [thread:$0]  %s1, 1024, %s30, [#allocation7], 64, 64, 4
    $region9: #{tpu_custom_call.1} parent=1 // pred_fallthru
      _
    // Predicated region
    $region10: #{tpu_custom_call.1} parent=1 // pred_check
      _
    $region11: #{tpu_custom_call.1} parent=1 // pred_check_branch
      %37 = sbr.rel (0) target = $region13
    $region12: #{tpu_custom_call.1} parent=1 // pred_region
      _
    $region13: #{tpu_custom_call.1} parent=1 // pred_fallthru
      _
    // Predicated region
    $region14: #{tpu_custom_call.1} parent=1 // pred_check
      _
    $region15: #{tpu_custom_call.1} parent=1 // pred_check_branch
      %39 = sbr.rel (0) target = $region17
    $region16: #{tpu_custom_call.1} parent=1 // pred_region
      _
    $region17: #{tpu_custom_call.1} parent=1 // pred_fallthru
      _
    // Predicated region
    $region18: #{tpu_custom_call.1} parent=1 // pred_check
      _
    $region19: #{tpu_custom_call.1} parent=1 // pred_check_branch
      %41 = sbr.rel (0) target = $region21
    $region20: #{tpu_custom_call.1} parent=1 // pred_region
      %42 = dma.done [#allocation4], 384
    $region21: #{tpu_custom_call.1} parent=1 // pred_fallthru
      _
    // Predicated region
    $region22: #{tpu_custom_call.1} parent=1 // pred_check
      _
    $region23: #{tpu_custom_call.1} parent=1 // pred_check_branch
      %44 = sbr.rel (0) target = $region25
    $region24: #{tpu_custom_call.1} parent=1 // pred_region
      %45 = dma.done [#allocation7], 1024
    $region25: #{tpu_custom_call.1} parent=1 // pred_fallthru
      _
    %p47 = scmp.eq.s32.totalorder 0, 0
    // Predicated region
    $region26: #{tpu_custom_call.1} parent=1 // pred_check
      %p48 = pneg %p47
    $region27: #{tpu_custom_call.1} parent=1 // pred_check_branch
      %50 = sbr.rel (%p48) target = $region29
    $region28: #{tpu_custom_call.1} parent=1 // pred_region
      %51 = vst [vmem:[#allocation2] sm:$0xff] 0.0
      %52 = vst [vmem:[#allocation2 + $0x8] sm:$0xff] 0.0
      %53 = vst [vmem:[#allocation2 + $0x10] sm:$0xff] 0.0
      %54 = vst [vmem:[#allocation2 + $0x18] sm:$0xff] 0.0
      %55 = vst [vmem:[#allocation2 + $0x20] sm:$0xff] 0.0
      %56 = vst [vmem:[#allocation2 + $0x28] sm:$0xff] 0.0
    $region29: #{tpu_custom_call.1} parent=1 // pred_fallthru
      _
    %v57 = vld [vmem:[#allocation2] sm:$0xff]
    %v58 = vld [vmem:[#allocation2 + $0x8] sm:$0xff]
    %v59 = vld [vmem:[#allocation2 + $0x10] sm:$0xff]
    %v60 = vld [vmem:[#allocation2 + $0x18] sm:$0xff]
    %v61 = vld [vmem:[#allocation2 + $0x20] sm:$0xff]
    %v62 = vld [vmem:[#allocation2 + $0x28] sm:$0xff]
    %v63 = vld [vmem:[#allocation3] sm:$0xf]
    %v64 = vld [vmem:[#allocation3 + $0x4] sm:$0xf]
    %v65 = vld [vmem:[#allocation3 + $0x8] sm:$0xf]
    %v66 = vld [vmem:[#allocation3 + $0xc] sm:$0xf]
    %v67 = vld [vmem:[#allocation3 + $0x10] sm:$0xf]
    %v68 = vld [vmem:[#allocation3 + $0x14] sm:$0xf]
    %v69 = vld [vmem:[#allocation6] sm:$0xf]
    %v70 = vld [vmem:[#allocation6 + $0x4] sm:$0xf]
    %v71 = vld [vmem:[#allocation6 + $0x8] sm:$0xf]
    %v72 = vld [vmem:[#allocation6 + $0xc] sm:$0xf]
    %v73 = vld [vmem:[#allocation6 + $0x10] sm:$0xf]
    %v74 = vld [vmem:[#allocation6 + $0x14] sm:$0xf]
    %v75 = vld [vmem:[#allocation6 + $0x18] sm:$0xf]
    %v76 = vld [vmem:[#allocation6 + $0x1c] sm:$0xf]
    %v77 = vld [vmem:[#allocation6 + $0x20] sm:$0xf]
    %v78 = vld [vmem:[#allocation6 + $0x24] sm:$0xf]
    %v79 = vld [vmem:[#allocation6 + $0x28] sm:$0xf]
    %v80 = vld [vmem:[#allocation6 + $0x2c] sm:$0xf]
    %v81 = vld [vmem:[#allocation6 + $0x30] sm:$0xf]
    %v82 = vld [vmem:[#allocation6 + $0x34] sm:$0xf]
    %v83 = vld [vmem:[#allocation6 + $0x38] sm:$0xf]
    %v84 = vld [vmem:[#allocation6 + $0x3c] sm:$0xf]
    %v91 = vunpack.c.l.b16 %v63
    %v92 = vunpack.c.l.b16 %v64
    %v93 = vunpack.c.l.b16 %v65
    %v94 = vunpack.c.l.b16 %v66
    %v95 = vunpack.c.l.b16 %v67
    %v96 = vunpack.c.l.b16 %v68
    %v97 = vpack.c.b16 %v92, %v91
    %v98 = vpack.c.b16 %v94, %v93
    %v99 = vpack.c.b16 %v96, %v95
    %v119 = vunpack.c.l.b16 %v69
    %v120 = vunpack.c.l.b16 %v70
    %v121 = vunpack.c.l.b16 %v71
    %v122 = vunpack.c.l.b16 %v72
    %v123 = vunpack.c.l.b16 %v73
    %v124 = vunpack.c.l.b16 %v74
    %v125 = vunpack.c.l.b16 %v75
    %v126 = vunpack.c.l.b16 %v76
    %v127 = vunpack.c.l.b16 %v77
    %v128 = vunpack.c.l.b16 %v78
    %v129 = vunpack.c.l.b16 %v79
    %v130 = vunpack.c.l.b16 %v80
    %v131 = vunpack.c.l.b16 %v81
    %v132 = vunpack.c.l.b16 %v82
    %v133 = vunpack.c.l.b16 %v83
    %v134 = vunpack.c.l.b16 %v84
    %v135 = vpack.c.b16 %v120, %v119
    %v136 = vpack.c.b16 %v122, %v121
    %v137 = vpack.c.b16 %v124, %v123
    %v138 = vpack.c.b16 %v126, %v125
    %v139 = vpack.c.b16 %v128, %v127
    %v140 = vpack.c.b16 %v130, %v129
    %v141 = vpack.c.b16 %v132, %v131
    %v142 = vpack.c.b16 %v134, %v133
    %151 = vmatprep.subr.bf16.mxu0 0
    %152 = vmatpush1.bf16.msra.mxu0 %v135
    %153 = vmatprep.subr.bf16.mxu0 0
    %154 = vmatpush1.bf16.msra.mxu0 %v136
    %155 = vmatprep.subr.bf16.mxu0 0
    %156 = vmatpush1.bf16.msra.mxu0 %v137
    %157 = vmatprep.subr.bf16.mxu0 0
    %158 = vmatpush1.bf16.msra.mxu0 %v138
    %159 = vmatprep.subr.bf16.mxu0 0
    %160 = vmatpush1.bf16.msra.mxu0 %v139
    %161 = vmatprep.subr.bf16.mxu0 0
    %162 = vmatpush1.bf16.msra.mxu0 %v140
    %163 = vmatprep.subr.bf16.mxu0 0
    %164 = vmatpush1.bf16.msra.mxu0 %v141
    %165 = vmatprep.subr.bf16.mxu0 0
    %166 = vmatpush1.bf16.msra.mxu0 %v142
    %167 = vmatprep.subr.bf16.mxu0 0
    %168 = vmatpush1.bf16.msra.mxu0 0
    %169 = vmatprep.subr.bf16.mxu0 0
    %170 = vmatpush1.bf16.msra.mxu0 0
    %171 = vmatprep.subr.bf16.mxu0 0
    %172 = vmatpush1.bf16.msra.mxu0 0
    %173 = vmatprep.subr.bf16.mxu0 0
    %174 = vmatpush1.bf16.msra.mxu0 0
    %175 = vmatprep.subr.bf16.mxu0 0
    %176 = vmatpush1.bf16.msra.mxu0 0
    %177 = vmatprep.subr.bf16.mxu0 0
    %178 = vmatpush1.bf16.msra.mxu0 0
    %179 = vmatprep.subr.bf16.mxu0 0
    %180 = vmatpush1.bf16.msra.mxu0 0
    %181 = vmatprep.subr.bf16.mxu0 0
    %182 = vmatpush1.bf16.msra.mxu0 0
    %183 = vmatprep.mubr.bf16.mxu0 0
    %184 = vmatmul.mubr.bf16.gmra.mrb[0].mxu0 %v97
    %v185 = vpop.f32.mrb[0].mxu0
    %v186 = vadd.f32 0.0, %v185
    %v187 = vpop.f32.mrb[0].mxu0
    %v188 = vpop.f32.mrb[0].mxu0
    %v189 = vadd.f32 0.0, %v188
    %v190 = vpop.f32.mrb[0].mxu0
    %191 = vmatprep.mubr.bf16.mxu0 0
    %192 = vmatmul.mubr.bf16.gmra.mrb[0].mxu0 %v98
    %v193 = vpop.f32.mrb[0].mxu0
    %v194 = vadd.f32 0.0, %v193
    %v195 = vpop.f32.mrb[0].mxu0
    %v196 = vpop.f32.mrb[0].mxu0
    %v197 = vadd.f32 0.0, %v196
    %v198 = vpop.f32.mrb[0].mxu0
    %199 = vmatprep.mubr.bf16.mxu0 0
    %200 = vmatmul.mubr.bf16.gmra.mrb[0].mxu0 %v99
    %v201 = vpop.f32.mrb[0].mxu0
    %v202 = vadd.f32 0.0, %v201
    %v203 = vpop.f32.mrb[0].mxu0
    %v204 = vpop.f32.mrb[0].mxu0
    %v205 = vadd.f32 0.0, %v204
    %v206 = vpop.f32.mrb[0].mxu0
    %207 = vdwg.mxu0
    %v208 = vadd.f32 %v57, %v186
    %v209 = vadd.f32 %v58, %v189
    %v210 = vadd.f32 %v59, %v194
    %v211 = vadd.f32 %v60, %v197
    %v212 = vadd.f32 %v61, %v202
    %v213 = vadd.f32 %v62, %v205
    %214 = vst [vmem:[#allocation2] sm:$0xff] %v208
    %215 = vst [vmem:[#allocation2 + $0x8] sm:$0xff] %v209
    %216 = vst [vmem:[#allocation2 + $0x10] sm:$0xff] %v210
    %217 = vst [vmem:[#allocation2 + $0x18] sm:$0xff] %v211
    %218 = vst [vmem:[#allocation2 + $0x20] sm:$0xff] %v212
    %219 = vst [vmem:[#allocation2 + $0x28] sm:$0xff] %v213
    // Predicated region
    $region30: #{tpu_custom_call.1} parent=1 // pred_check
      %p220 = pneg %p47
    $region31: #{tpu_custom_call.1} parent=1 // pred_check_branch
      %222 = sbr.rel (%p220) target = $region33
    $region32: #{tpu_custom_call.1} parent=1 // pred_region
      %v223 = vld [vmem:[#allocation2] sm:$0xff]
      %v224 = vld [vmem:[#allocation2 + $0x8] sm:$0xff]
      %v225 = vld [vmem:[#allocation2 + $0x10] sm:$0xff]
      %v226 = vld [vmem:[#allocation2 + $0x18] sm:$0xff]
      %v227 = vld [vmem:[#allocation2 + $0x20] sm:$0xff]
      %v228 = vld [vmem:[#allocation2 + $0x28] sm:$0xff]
      %v229 = vld [vmem:[%s2] sm:$0x1]
      %v231 = vlaneseq
      %v232 = vshrl.u32 %v231, 7
      %v233 = vsub.s32 0, %v232
      %v234 = vrot.slane %v229, %v233
      %v236 = vmul.f32 %v223, %v234
      %v237 = vmul.f32 %v224, %v234
      %v238 = vmul.f32 %v225, %v234
      %v239 = vmul.f32 %v226, %v234
      %v240 = vmul.f32 %v227, %v234
      %v241 = vmul.f32 %v228, %v234
      %v242 = vld [vmem:[%s3] sm:$0x1]
      %v244 = vlaneseq
      %v245 = vshrl.u32 %v244, 7
      %v246 = vsub.s32 0, %v245
      %v247 = vrot.slane %v242, %v246
      %v249 = vadd.f32 %v236, %v247
      %v250 = vadd.f32 %v237, %v247
      %v251 = vadd.f32 %v238, %v247
      %v252 = vadd.f32 %v239, %v247
      %v253 = vadd.f32 %v240, %v247
      %v254 = vadd.f32 %v241, %v247
      %v255 = vmax.f32 %v249, 0.0
      %v256 = vmax.f32 %v250, 0.0
      %v257 = vmax.f32 %v251, 0.0
      %v258 = vmax.f32 %v252, 0.0
      %v259 = vmax.f32 %v253, 0.0
      %v260 = vmax.f32 %v254, 0.0
      %261 = vst [vmem:[#allocation8] sm:$0xff] %v255
      %262 = vst [vmem:[#allocation8 + $0x8] sm:$0xff] %v256
      %263 = vst [vmem:[#allocation8 + $0x10] sm:$0xff] %v257
      %264 = vst [vmem:[#allocation8 + $0x18] sm:$0xff] %v258
      %265 = vst [vmem:[#allocation8 + $0x20] sm:$0xff] %v259
      %266 = vst [vmem:[#allocation8 + $0x28] sm:$0xff] %v260
    $region33: #{tpu_custom_call.1} parent=1 // pred_fallthru
      _
    // Predicated region
    $region34: #{tpu_custom_call.1} parent=1 // pred_check
      _
    $region35: #{tpu_custom_call.1} parent=1 // pred_check_branch
      %268 = sbr.rel (0) target = $region37
    $region36: #{tpu_custom_call.1} parent=1 // pred_region
      %s270 = ssub.s32 768, 768
      %271 = vsyncadd [#allocation5], %s270
      %s272 = sshll.u32 [#allocation8], 4
      %s273 = int_to_ptr.vmem [resolvable:$true] %s272
      %278 = dma.vmem_to_hbm [thread:$0]  %s273, 768, %s4, [#allocation5], 128, 128, 8
    $region37: #{tpu_custom_call.1} parent=1 // pred_fallthru
      _
    // Predicated region
    $region38: #{tpu_custom_call.1} parent=1 // pred_check
      _
    $region39: #{tpu_custom_call.1} parent=1 // pred_check_branch
      %280 = sbr.rel (0) target = $region41
    $region40: #{tpu_custom_call.1} parent=1 // pred_region
      %281 = dma.done [#allocation5], 768
    $region41: #{tpu_custom_call.1} parent=1 // pred_fallthru
      _
    %282 = vsyncpa [#allocation4], 1
    %283 = vsyncpa [#allocation7], 1
    %284 = vsyncpa [#allocation5], 1

</llo_original>
